<compile_context>
chip_gen: v5e
topology: v5e:2x2
jax: 0.10.0
libtpu: 0.0.40
codegen_flags: <defaults>
</compile_context>

<pallas_src>
import jax
import jax.numpy as jnp
import numpy as np
from jax.experimental import pallas as pl
from jax.experimental.pallas import tpu as pltpu

_LANES = 128
_SUBLANES = 8
_TARGET_BLOCK_BYTES = 4 * 1024 * 1024   # per input buffer (x2 for double-buffering)
_MAX_BLOCK_ROWS = 8192


def _round_up(n, m):
    return ((n + m - 1) // m) * m


def _pick_batch_tile(batch, features):
    """Largest 8-aligned batch tile that keeps one input buffer <= ~4 MiB."""
    lane_padded = _round_up(max(features, 1), _LANES)        # VMEM lane padding
    rows_by_vmem = (_TARGET_BLOCK_BYTES // (lane_padded * 4)) // _SUBLANES * _SUBLANES
    rows_by_vmem = max(_SUBLANES, rows_by_vmem)
    return min(rows_by_vmem, _MAX_BLOCK_ROWS, _round_up(batch, _SUBLANES))


def _classifier_kernel(x_ref, w_ref, b_ref, o_ref):
    """sigmoid(x @ W^T + b) for one (TB, F) batch tile."""
    x = x_ref[...]                        # (TB, F) f32, batch on sublanes
    w = w_ref[...]                        # (1, F)  f32, broadcasts over TB
    b = b_ref[0]                          # scalar bias from SMEM
    # VPU multiply + XLU cross-lane reduce instead of an N=1 MXU matmul.
    logits = jnp.sum(x * w, axis=-1, keepdims=True) + b
    o_ref[...] = jax.nn.sigmoid(logits).astype(o_ref.dtype)   # EUP


@jax.jit
def classifier_forward(x, w_row, bias):
    """x: (..., F) f32; w_row: (1, F) f32; bias: (1,) f32 -> (..., 1) f32."""
    feat = x.shape[-1]
    lead = x.shape[:-1]
    x2 = x.reshape(-1, feat)
    batch = x2.shape[0]

    tb = _pick_batch_tile(batch, feat)
    batch_pad = _round_up(batch, tb)
    if batch_pad != batch:
        x2 = jnp.pad(x2, ((0, batch_pad - batch), (0, 0)))    # guard the tail block

    grid = (batch_pad // tb,)

    cost = pl.CostEstimate(
        flops=2 * batch_pad * feat + batch_pad,
        transcendentals=batch_pad,                             # one sigmoid per row
        bytes_accessed=(batch_pad * feat + feat + 1 + batch_pad) * 4,
    )

    out = pl.pallas_call(
        _classifier_kernel,
        out_shape=jax.ShapeDtypeStruct((batch_pad, 1), jnp.float32),
        grid=grid,
        in_specs=[
            pl.BlockSpec((tb, feat), lambda i: (i, 0)),        # batch-tiled input
            pl.BlockSpec((1, feat), lambda i: (0, 0)),         # resident weight row
            pl.BlockSpec(memory_space=pltpu.MemorySpace.SMEM), # scalar bias in SMEM
        ],
        out_specs=pl.BlockSpec((tb, 1), lambda i: (i, 0)),
        compiler_params=pltpu.CompilerParams(
            dimension_semantics=("parallel",),                 # v7x dual-TC sharding
            vmem_limit_bytes=32 * 1024 * 1024,
        ),
        cost_estimate=cost,
    )(x2, w_row, bias)

    return out[:batch].reshape(lead + (1,))


def init_params(key, n_links):
    """Match the PyTorch module's init: xavier_uniform_ weight, default bias."""
    fan_in = n_links * 3
    k_w, k_b = jax.random.split(key)
    w_bound = np.sqrt(6.0 / (fan_in + 1))                      # xavier_uniform_ (fan_out=1)
    w_row = jax.random.uniform(k_w, (1, fan_in), jnp.float32, -w_bound, w_bound)
    b_bound = 1.0 / np.sqrt(fan_in)                            # default nn.Linear bias init
    bias = jax.random.uniform(k_b, (1,), jnp.float32, -b_bound, b_bound)
    return w_row, bias


def _reference_forward(x, w_row, bias):
    """Plain-JAX reference for correctness checking (handles leading dims)."""
    return jax.nn.sigmoid(x @ w_row.T + bias[0])


if __name__ == "__main__":
    key = jax.random.PRNGKey(0)
    k_params, k_x, k_x3 = jax.random.split(key, 3)

    n_links = 4
    n_features = n_links * 3            # 12
    batch = 10                          # not a multiple of 8 -> exercises tail padding

    w_row, bias = init_params(k_params, n_links)

    # 2-D input (standard case)
    x = jax.random.normal(k_x, (batch, n_features), dtype=jnp.float32)
    out = jax.block_until_ready(classifier_forward(x, w_row, bias))
    ref = _reference_forward(x, w_row, bias)
    np.testing.assert_allclose(np.asarray(out), np.asarray(ref), rtol=1e-5, atol=1e-6)
    assert out.shape == (batch, 1)

    # 3-D input (nn.Linear accepts arbitrary leading dims)
    x3 = jax.random.normal(k_x3, (2, 5, n_features), dtype=jnp.float32)
    out3 = jax.block_until_ready(classifier_forward(x3, w_row, bias))
    ref3 = _reference_forward(x3, w_row, bias)
    np.testing.assert_allclose(np.asarray(out3), np.asarray(ref3), rtol=1e-5, atol=1e-6)
    assert out3.shape == (2, 5, 1)

    print("KERNEL_OK")
</pallas_src>

<mosaic_0001>
module attributes {stable_mosaic.version = 11 : i64} {
  func.func @_classifier_kernel(%arg0: i32, %arg1: memref<16x12xf32, #tpu.memory_space<vmem>>, %arg2: memref<1x12xf32, #tpu.memory_space<vmem>>, %arg3: memref<1xf32, #tpu.memory_space<smem>>, %arg4: memref<16x1xf32, #tpu.memory_space<vmem>>) attributes {dimension_semantics = [#tpu.dimension_semantics<parallel>], iteration_bounds = array<i64: 1>, scalar_prefetch = 0 : i64, scratch_operands = 0 : i64, tpu.core_type = #tpu.core_type<tc>, window_params = [{transform_indices = @transform_0, window_bounds = array<i64: 16, 12>}, {pipeline_mode = #tpu.pipeline_mode<synchronous>, transform_indices = @transform_1, window_bounds = array<i64: 1, 12>}, {transform_indices = @transform_2, window_bounds = array<i64: 1>}, {transform_indices = @transform_3, window_bounds = array<i64: 16, 1>}]} {
    %c0 = arith.constant 0 : index
    %c0_0 = arith.constant 0 : index
    %0 = vector.load %arg1[%c0, %c0_0] : memref<16x12xf32, #tpu.memory_space<vmem>>, vector<16x12xf32>
    %c0_1 = arith.constant 0 : index
    %c0_2 = arith.constant 0 : index
    %1 = vector.load %arg2[%c0_1, %c0_2] : memref<1x12xf32, #tpu.memory_space<vmem>>, vector<1x12xf32>
    %c0_3 = arith.constant 0 : index
    %2 = memref.load %arg3[%c0_3] : memref<1xf32, #tpu.memory_space<smem>>
    %3 = vector.broadcast %1 : vector<1x12xf32> to vector<16x12xf32>
    %4 = arith.mulf %0, %3 : vector<16x12xf32>
    %cst = arith.constant dense<0.000000e+00> : vector<16xf32>
    %5 = vector.multi_reduction <add>, %4, %cst [1] : vector<16x12xf32> to vector<16xf32>
    %6 = vector.shape_cast %5 : vector<16xf32> to vector<16x1xf32>
    %7 = vector.broadcast %2 : f32 to vector<16x1xf32>
    %8 = arith.addf %6, %7 : vector<16x1xf32>
    %9 = arith.negf %8 : vector<16x1xf32>
    %10 = math.exp %9 : vector<16x1xf32>
    %cst_4 = arith.constant 1.000000e+00 : f32
    %11 = vector.broadcast %cst_4 : f32 to vector<16x1xf32>
    %12 = arith.addf %11, %10 : vector<16x1xf32>
    %13 = arith.divf %11, %12 : vector<16x1xf32>
    %c0_5 = arith.constant 0 : index
    %c0_6 = arith.constant 0 : index
    %14 = vector.load %arg4[%c0_5, %c0_6] : memref<16x1xf32, #tpu.memory_space<vmem>>, vector<16x1xf32>
    tpu.vector_store %arg4[%c0_5, %c0_6], %13 {strides = array<i32>} : memref<16x1xf32, #tpu.memory_space<vmem>>, vector<16x1xf32>,
    return
  }
  func.func @transform_0(%arg0: i32) -> (i32, i32) {
    %c0_i32 = arith.constant 0 : i32
    %c0_i32_0 = arith.constant 0 : i32
    return %arg0, %c0_i32 : i32, i32
  }
  func.func @transform_1(%arg0: i32) -> (i32, i32) {
    %c0_i32 = arith.constant 0 : i32
    %c0_i32_0 = arith.constant 0 : i32
    %c0_i32_1 = arith.constant 0 : i32
    return %c0_i32, %c0_i32_0 : i32, i32
  }
  func.func @transform_2(%arg0: i32) -> i32 {
    %c0_i32 = arith.constant 0 : i32
    %c0_i32_0 = arith.constant 0 : i32
    return %c0_i32 : i32
  }
  func.func @transform_3(%arg0: i32) -> (i32, i32) {
    %c0_i32 = arith.constant 0 : i32
    %c0_i32_0 = arith.constant 0 : i32
    return %arg0, %c0_i32 : i32, i32
  }
}

</mosaic_0001>

<llo_original>
// kernel: classifier_forward.1
$region0: #{classifier_forward.1}
  #allocation0 [shape = 'u32[]', space=smem, size = 0x4, offset = 0x4, fixed_abs, tag = 'smem constant byte address 0x4 - core index']
  #allocation1 [shape = 'u32[72,128]{1,0:T(1,128)}', space=vmem, size = 0x9000, scoped, tag = 'internal scratch']
  #allocation2 [shape = 'f32[1]{0:T(128)S(6)}', space=smem, size = 0x200, scoped, tag = 'scoped memory for classifier_forward.1']
  %s0 = inlined_call_operand.vmem [shape: f32[16,12], index: 0, kind: input, shape index: {}]
  %s1 = inlined_call_operand.vmem [shape: f32[1,12], index: 1, kind: input, shape index: {}]
  %s2 = inlined_call_operand.<no memory space> [shape: f32[1], index: 2, kind: input, shape index: {}]
  %s3 = inlined_call_operand.vmem [shape: f32[16,1], index: 3, kind: output, shape index: {}]
  %s4 = sld [smem:[#allocation0]]
  $region22: #{classifier_forward.1} parent=0
    _
  %s6 = ssub.s32 1, %s4
  %s7 = scalar_select 0, %s6, %s4
  %8 = sst [smem:[#allocation2]] %s2
  // Predicated region
  $region2: #{classifier_forward.1} parent=0 // pred_check
    _
  $region3: #{classifier_forward.1} parent=0 // pred_check_branch
    %10 = sbr.rel (0) target = $region5
  $region4: #{classifier_forward.1} parent=0 // pred_region
    _
  $region5: #{classifier_forward.1} parent=0 // pred_fallthru
    _
  // Predicated region
  $region6: #{classifier_forward.1} parent=0 // pred_check
    _
  $region7: #{classifier_forward.1} parent=0 // pred_check_branch
    %12 = sbr.rel (0) target = $region9
  $region8: #{classifier_forward.1} parent=0 // pred_region
    _
  $region9: #{classifier_forward.1} parent=0 // pred_fallthru
    _
  // Predicated region
  $region10: #{classifier_forward.1} parent=0 // pred_check
    _
  $region11: #{classifier_forward.1} parent=0 // pred_check_branch
    %14 = sbr.rel (0) target = $region13
  $region12: #{classifier_forward.1} parent=0 // pred_region
    _
  $region13: #{classifier_forward.1} parent=0 // pred_fallthru
    _
  %v15 = vld [vmem:[%s0] sm:$0xff]
  %v16 = vld [vmem:[%s0 + $0x8] sm:$0xff]
  %v17 = vld [vmem:[%s1] sm:$0x1]
  %s18 = sld [smem:[#allocation2]]
  %v20 = vperm.slane %v17, 0
  %v22 = vmul.f32 %v15, %v20
  %v23 = vmul.f32 %v16, %v20
  %vm24 = vcmask 97280
  %v25 = vsel %vm24, %v22, 0.0
  %26 = vadd.xlane.f32.xlu0 %v25
  %v27 = vpop.xlane.xlu0 %26
  %v28 = vsel %vm24, %v23, 0.0
  %29 = vadd.xlane.f32.xlu0 %v28
  %v30 = vpop.xlane.xlu0 %29
  %v31 = vstv %s18
  %v32 = vadd.f32 %v27, %v31
  %v33 = vadd.f32 %v30, %v31
  %v34 = vxor.u32 %v32, 2147483648
  %v35 = vxor.u32 %v33, 2147483648
  %v36 = vmul.f32 %v34, 1.442695
  %v37 = vpow.pop %v36
  %v38 = vmul.f32 %v35, 1.442695
  %v39 = vpow.pop %v38
  %v40 = vadd.f32 %v37, 1.0
  %v41 = vadd.f32 %v39, 1.0
  %v42 = vrcp.pop %v40
  %v43 = vmul.f32 %v40, %v42
  %v44 = vsub.f32 1.0, %v43
  %v45 = vmul.f32 %v42, %v44
  %v46 = vadd.f32 %v42, %v45
  %vm47 = vweird.f32 %v40
  %vm48 = vweird.f32 %v42
  %vm49 = vmor %vm47, %vm48
  %v50 = vsel %vm49, %v42, %v46
  %v51 = vand.u32 2147483647, %v40
  %vm52 = vcmp.eq.f32.partialorder %v51, 8.507059e+37
  %v53 = vand.u32 %v40, 2147483648
  %v54 = vor.u32 1.1754944e-38, %v53
  %v55 = vsel %vm52, %v54, %v50
  %v56 = vmul.f32 1.0, %v55
  %v57 = vrcp.pop %v41
  %v58 = vmul.f32 %v41, %v57
  %v59 = vsub.f32 1.0, %v58
  %v60 = vmul.f32 %v57, %v59
  %v61 = vadd.f32 %v57, %v60
  %vm62 = vweird.f32 %v41
  %vm63 = vweird.f32 %v57
  %vm64 = vmor %vm62, %vm63
  %v65 = vsel %vm64, %v57, %v61
  %v66 = vand.u32 2147483647, %v41
  %vm67 = vcmp.eq.f32.partialorder %v66, 8.507059e+37
  %v68 = vand.u32 %v41, 2147483648
  %v69 = vor.u32 1.1754944e-38, %v68
  %v70 = vsel %vm67, %v69, %v65
  %v71 = vmul.f32 1.0, %v70
  %vm72 = vcmask 7168
  %73 = vst.msk [vmem:[%s3] sm:$0xff] %vm72, %v56
  %74 = vst.msk [vmem:[%s3 + $0x8] sm:$0xff] %vm72, %v71
  // Predicated region
  $region14: #{classifier_forward.1} parent=0 // pred_check
    _
  $region15: #{classifier_forward.1} parent=0 // pred_check_branch
    %76 = sbr.rel (0) target = $region17
  $region16: #{classifier_forward.1} parent=0 // pred_region
    _
  $region17: #{classifier_forward.1} parent=0 // pred_fallthru
    _
  // Predicated region
  $region18: #{classifier_forward.1} parent=0 // pred_check
    _
  $region19: #{classifier_forward.1} parent=0 // pred_check_branch
    %78 = sbr.rel (0) target = $region21
  $region20: #{classifier_forward.1} parent=0 // pred_region
    _
  $region21: #{classifier_forward.1} parent=0 // pred_fallthru
    _

</llo_original>
